<compile_context>
chip_gen: v7x
topology: tpu7x:2x2x1
jax: 0.10.0
libtpu: 0.0.40
codegen_flags: <defaults>
</compile_context>

<pallas_src>
import functools

import jax
import jax.numpy as jnp
from jax import lax
from jax.experimental import pallas as pl
from jax.experimental.pallas import tpu as pltpu


# ---------------------------------------------------------------- kernel ----
def _s2_kernel(x_ref, a_ref, b_ref, o_ref, *, h):
    # x_ref : (1, C, WH) f32   input, channel-first, spatial flattened (w-major)
    # a_ref : (5, C, C)  bf16  stacked folded weights [(A_g @ W2)^T for g in
    #                          (id, wp, wm, hp, hm)] — leading axis indexed
    #                          statically (cheap major-dim offset, no lane slicing)
    # b_ref : (C, 1)     f32   fully folded bias (reducer + mlp2)
    # o_ref : (1, C, WH) f32   output (lane-dense: WH is a multiple of 128)
    wh = x_ref.shape[2]
    x = x_ref[0]                                             # (C, WH) f32

    # Lane / column masks from a single (1, WH) iota; broadcast inside jnp.where.
    lane = lax.broadcasted_iota(jnp.int32, (1, wh), 1)
    if h > 0 and (h & (h - 1)) == 0:                         # static python check
        col = jnp.bitwise_and(lane, h - 1)                   # lane index within a row
    else:
        col = lane % h

    def mm(g, slab):
        # (C, C) bf16 @ (C, WH) bf16 -> (C, WH) f32 on the MXU.
        return jnp.dot(a_ref[g], slab.astype(jnp.bfloat16),
                       preferred_element_type=jnp.float32)

    # Spatial shifts of x along the flattened (W*H) lane axis (XLU rolls).
    # Edge rows/cols keep their original values (functional shift semantics).
    # Each shifted slab is built right before its accumulating dot.
    acc = mm(0, x)                                                       # identity
    x_wp = jnp.where(lane < h,       x, pltpu.roll(x, h, 1))             # row w <- w-1
    acc = acc + mm(1, x_wp)
    x_wm = jnp.where(lane >= wh - h, x, pltpu.roll(x, wh - h, 1))        # row w <- w+1
    acc = acc + mm(2, x_wm)
    x_hp = jnp.where(col == 0,       x, pltpu.roll(x, 1, 1))             # col h <- h-1
    acc = acc + mm(3, x_hp)
    x_hm = jnp.where(col == h - 1,   x, pltpu.roll(x, wh - 1, 1))        # col h <- h+1
    acc = acc + mm(4, x_hm)

    o_ref[0] = (acc + b_ref[...]).astype(o_ref.dtype)


# ---------------------------------------------------- wrapper (param fold) ----
def _fold_params(params):
    (w1a, w1b, w1c, b1a, b1b, b1c, dw1w, dw1b, dw2w, dw2b,
     wr1, wr2, wr3, br, w2, b2) = params
    c = w1a.shape[0]
    q = c // 4

    # Fold the depthwise 1x1 convs (per-channel scale) into the reducer rows.
    wr1p = dw1w.reshape(c, 1) * wr1
    wr2p = dw2w.reshape(c, 1) * wr2

    # Group the shifted channel-quarters by shift type (shift1 uses wp/wm/hp/hm,
    # shift2 uses hp/hm/wp/wm) and fold mlp1 into the reducer.
    a_id = w1c @ wr3
    a_wp = w1a[:, 0 * q:1 * q] @ wr1p[0 * q:1 * q] + w1b[:, 2 * q:3 * q] @ wr2p[2 * q:3 * q]
    a_wm = w1a[:, 1 * q:2 * q] @ wr1p[1 * q:2 * q] + w1b[:, 3 * q:4 * q] @ wr2p[3 * q:4 * q]
    a_hp = w1a[:, 2 * q:3 * q] @ wr1p[2 * q:3 * q] + w1b[:, 0 * q:1 * q] @ wr2p[0 * q:1 * q]
    a_hm = w1a[:, 3 * q:4 * q] @ wr1p[3 * q:4 * q] + w1b[:, 1 * q:2 * q] @ wr2p[1 * q:2 * q]

    # Fold mlp1 biases (spatially constant -> commute with the shifts) and the
    # depthwise-conv biases into the reducer bias.
    brp = (br + (b1a * dw1w + dw1b) @ wr1 + (b1b * dw2w + dw2b) @ wr2 + b1c @ wr3)

    # Fold mlp2 into the reducer (drops the second in-kernel dot entirely):
    #   out = sum_g shift_g(x) @ (A_g @ W2) + (br' @ W2 + b2)
    # Kernel works channel-first, so store each (A_g @ W2)^T, stacked on a
    # leading axis (static-indexable, no lane-offset slicing in the kernel).
    a_stack = jnp.stack(
        [(a_g @ w2).T for a_g in (a_id, a_wp, a_wm, a_hp, a_hm)], axis=0)
    b_fold = (brp @ w2 + b2).T

    return (a_stack.astype(jnp.bfloat16),      # (5, C, C) bf16
            b_fold.astype(jnp.float32))        # (C, 1)    f32


def s2_attention(x_nchw, params):
    b, c, w, h = x_nchw.shape
    assert c % 4 == 0, "channels must be divisible by 4"
    wh = w * h

    a_stack, b_fold = _fold_params(params)
    x3 = x_nchw.reshape(b, c, wh).astype(jnp.float32)      # NCHW -> (B, C, W*H), no transpose

    kernel = functools.partial(_s2_kernel, h=h)
    out3 = pl.pallas_call(
        kernel,
        out_shape=jax.ShapeDtypeStruct((b, c, wh), jnp.float32),
        grid_spec=pltpu.PrefetchScalarGridSpec(
            num_scalar_prefetch=0,
            grid=(b,),
            in_specs=[
                pl.BlockSpec((1, c, wh), lambda i: (i, 0, 0)),     # x (per batch element)
                pl.BlockSpec((5, c, c), lambda i: (0, 0, 0)),      # folded weights
                pl.BlockSpec((c, 1), lambda i: (0, 0)),            # folded bias
            ],
            out_specs=pl.BlockSpec((1, c, wh), lambda i: (i, 0, 0)),
        ),
        compiler_params=pltpu.CompilerParams(dimension_semantics=("parallel",)),
    )(x3, a_stack, b_fold)
    return out3.reshape(b, c, w, h)                        # back to NCHW, no transpose


# ------------------------------------------------------------- reference ----
def s2_attention_ref(x_nchw, params):
    """Pure-JAX reference mirroring the original (unfused) module math in f32."""
    (w1a, w1b, w1c, b1a, b1b, b1c, dw1w, dw1b, dw2w, dw2b,
     wr1, wr2, wr3, br, w2, b2) = params
    b, c, w, h = x_nchw.shape
    x = jnp.transpose(x_nchw, (0, 2, 3, 1)).astype(jnp.float32)  # (b, w, h, c)
    y1 = x @ w1a + b1a
    y2 = x @ w1b + b1b
    y3 = x @ w1c + b1c

    def shift(t, order):
        ch = lax.broadcasted_iota(jnp.int32, t.shape, 3)
        swp = jnp.concatenate([t[:, :1], t[:, :-1]], axis=1)
        swm = jnp.concatenate([t[:, 1:], t[:, -1:]], axis=1)
        shp = jnp.concatenate([t[:, :, :1], t[:, :, :-1]], axis=2)
        shm = jnp.concatenate([t[:, :, 1:], t[:, :, -1:]], axis=2)
        opts = {"wp": swp, "wm": swm, "hp": shp, "hm": shm}
        a, bb, cc, d = (opts[o] for o in order)
        return jnp.where(ch < c // 4, a, jnp.where(ch < c // 2, bb,
               jnp.where(ch < 3 * c // 4, cc, d)))

    x1 = shift(y1, ("wp", "wm", "hp", "hm")) * dw1w + dw1b
    x2 = shift(y2, ("hp", "hm", "wp", "wm")) * dw2w + dw2b
    xr = x1 @ wr1 + x2 @ wr2 + y3 @ wr3 + br
    out = xr @ w2 + b2
    return jnp.transpose(out, (0, 3, 1, 2))


# ----------------------------------------------------------------- setup ----
def make_params(key, c):
    ks = jax.random.split(key, 16)
    s = 0.05
    w1a = jax.random.normal(ks[0], (c, c), jnp.float32) * s
    w1b = jax.random.normal(ks[1], (c, c), jnp.float32) * s
    w1c = jax.random.normal(ks[2], (c, c), jnp.float32) * s
    b1a = jax.random.normal(ks[3], (1, c), jnp.float32) * s
    b1b = jax.random.normal(ks[4], (1, c), jnp.float32) * s
    b1c = jax.random.normal(ks[5], (1, c), jnp.float32) * s
    dw1w = jax.random.normal(ks[6], (1, c), jnp.float32) * s + 1.0
    dw1b = jax.random.normal(ks[7], (1, c), jnp.float32) * s
    dw2w = jax.random.normal(ks[8], (1, c), jnp.float32) * s + 1.0
    dw2b = jax.random.normal(ks[9], (1, c), jnp.float32) * s
    wr1 = jax.random.normal(ks[10], (c, c), jnp.float32) * s
    wr2 = jax.random.normal(ks[11], (c, c), jnp.float32) * s
    wr3 = jax.random.normal(ks[12], (c, c), jnp.float32) * s
    br = jax.random.normal(ks[13], (1, c), jnp.float32) * s
    w2 = jax.random.normal(ks[14], (c, c), jnp.float32) * s
    b2 = jax.random.normal(ks[15], (1, c), jnp.float32) * s
    return (w1a, w1b, w1c, b1a, b1b, b1c, dw1w, dw1b, dw2w, dw2b,
            wr1, wr2, wr3, br, w2, b2)


if __name__ == "__main__":
    B, C, W, H = 2, 32, 16, 16          # NCHW; C divisible by 4
    key = jax.random.PRNGKey(0)
    kx, kp = jax.random.split(key)
    x = jax.random.normal(kx, (B, C, W, H), jnp.float32)
    params = make_params(kp, C)

    out = jax.block_until_ready(s2_attention(x, params))
    ref = jax.block_until_ready(s2_attention_ref(x, params))

    assert out.shape == (B, C, W, H), out.shape
    max_err = float(jnp.max(jnp.abs(out - ref)))
    # bf16 MXU operands with f32 accumulation -> tolerance loosened vs pure f32.
    assert jnp.allclose(out, ref, atol=1e-2, rtol=1e-2), max_err
    print("KERNEL_OK")
</pallas_src>

<mosaic_0001>
module attributes {stable_mosaic.version = 11 : i64} {
  func.func @_s2_kernel(%arg0: i32, %arg1: memref<1x32x256xf32, #tpu.memory_space<vmem>>, %arg2: memref<5x32x32xbf16, #tpu.memory_space<vmem>>, %arg3: memref<32x1xf32, #tpu.memory_space<vmem>>, %arg4: memref<1x32x256xf32, #tpu.memory_space<vmem>>) attributes {dimension_semantics = [#tpu.dimension_semantics<parallel>], iteration_bounds = array<i64: 2>, scalar_prefetch = 0 : i64, scratch_operands = 0 : i64, tpu.core_type = #tpu.core_type<tc>, window_params = [{transform_indices = @transform_0, window_bounds = array<i64: 1, 32, 256>}, {pipeline_mode = #tpu.pipeline_mode<synchronous>, transform_indices = @transform_1, window_bounds = array<i64: 5, 32, 32>}, {pipeline_mode = #tpu.pipeline_mode<synchronous>, transform_indices = @transform_2, window_bounds = array<i64: 32, 1>}, {transform_indices = @transform_3, window_bounds = array<i64: 1, 32, 256>}]} {
    %c0 = arith.constant 0 : index
    %c0_0 = arith.constant 0 : index
    %c0_1 = arith.constant 0 : index
    %0 = vector.load %arg1[%c0, %c0_0, %c0_1] : memref<1x32x256xf32, #tpu.memory_space<vmem>>, vector<1x32x256xf32>
    %1 = vector.shape_cast %0 : vector<1x32x256xf32> to vector<32x256xf32>
    %2 = tpu.iota {dimensions = array<i32: 1>} : vector<1x256xi32>
    %c15_i32 = arith.constant 15 : i32
    %3 = vector.broadcast %c15_i32 : i32 to vector<1x256xi32>
    %4 = arith.andi %2, %3 : vector<1x256xi32>
    %c0_2 = arith.constant 0 : index
    %c0_3 = arith.constant 0 : index
    %c0_4 = arith.constant 0 : index
    %5 = vector.load %arg2[%c0_2, %c0_3, %c0_4] : memref<5x32x32xbf16, #tpu.memory_space<vmem>>, vector<1x32x32xbf16>
    %6 = vector.shape_cast %5 : vector<1x32x32xbf16> to vector<32x32xbf16>
    %7 = arith.truncf %1 : vector<32x256xf32> to vector<32x256xbf16>
    %cst = arith.constant dense<0.000000e+00> : vector<32x256xf32>
    %8 = tpu.matmul %6, %7, %cst {dimension_numbers = #tpu.dot_dimension_numbers<[1], [0], [0], [1], [0, 0, 1, 1], [], []>} : vector<32x32xbf16>, vector<32x256xbf16>, vector<32x256xf32> -> vector<32x256xf32>
    %c16_i32 = arith.constant 16 : i32
    %9 = vector.broadcast %c16_i32 : i32 to vector<1x256xi32>
    %10 = arith.cmpi slt, %2, %9 : vector<1x256xi32>
    %c16_i32_5 = arith.constant 16 : i32
    %11 = tpu.dynamic_rotate %1 by %c16_i32_5 dim 1 : vector<32x256xf32>, i32 -> vector<32x256xf32>
    %12 = vector.shape_cast %10 : vector<1x256xi1> to vector<1x256xi1>
    %13 = vector.broadcast %12 : vector<1x256xi1> to vector<32x256xi1>
    %14 = arith.select %13, %1, %11 : vector<32x256xi1>, vector<32x256xf32>
    %c1 = arith.constant 1 : index
    %c0_6 = arith.constant 0 : index
    %c0_7 = arith.constant 0 : index
    %15 = vector.load %arg2[%c1, %c0_6, %c0_7] : memref<5x32x32xbf16, #tpu.memory_space<vmem>>, vector<1x32x32xbf16>
    %16 = vector.shape_cast %15 : vector<1x32x32xbf16> to vector<32x32xbf16>
    %17 = arith.truncf %14 : vector<32x256xf32> to vector<32x256xbf16>
    %cst_8 = arith.constant dense<0.000000e+00> : vector<32x256xf32>
    %18 = tpu.matmul %16, %17, %cst_8 {dimension_numbers = #tpu.dot_dimension_numbers<[1], [0], [0], [1], [0, 0, 1, 1], [], []>} : vector<32x32xbf16>, vector<32x256xbf16>, vector<32x256xf32> -> vector<32x256xf32>
    %19 = arith.addf %8, %18 : vector<32x256xf32>
    %c240_i32 = arith.constant 240 : i32
    %20 = vector.broadcast %c240_i32 : i32 to vector<1x256xi32>
    %21 = arith.cmpi sge, %2, %20 : vector<1x256xi32>
    %c240_i32_9 = arith.constant 240 : i32
    %22 = tpu.dynamic_rotate %1 by %c240_i32_9 dim 1 : vector<32x256xf32>, i32 -> vector<32x256xf32>
    %23 = vector.shape_cast %21 : vector<1x256xi1> to vector<1x256xi1>
    %24 = vector.broadcast %23 : vector<1x256xi1> to vector<32x256xi1>
    %25 = arith.select %24, %1, %22 : vector<32x256xi1>, vector<32x256xf32>
    %c2 = arith.constant 2 : index
    %c0_10 = arith.constant 0 : index
    %c0_11 = arith.constant 0 : index
    %26 = vector.load %arg2[%c2, %c0_10, %c0_11] : memref<5x32x32xbf16, #tpu.memory_space<vmem>>, vector<1x32x32xbf16>
    %27 = vector.shape_cast %26 : vector<1x32x32xbf16> to vector<32x32xbf16>
    %28 = arith.truncf %25 : vector<32x256xf32> to vector<32x256xbf16>
    %cst_12 = arith.constant dense<0.000000e+00> : vector<32x256xf32>
    %29 = tpu.matmul %27, %28, %cst_12 {dimension_numbers = #tpu.dot_dimension_numbers<[1], [0], [0], [1], [0, 0, 1, 1], [], []>} : vector<32x32xbf16>, vector<32x256xbf16>, vector<32x256xf32> -> vector<32x256xf32>
    %30 = arith.addf %19, %29 : vector<32x256xf32>
    %c0_i32 = arith.constant 0 : i32
    %31 = vector.broadcast %c0_i32 : i32 to vector<1x256xi32>
    %32 = arith.cmpi eq, %4, %31 : vector<1x256xi32>
    %c1_i32 = arith.constant 1 : i32
    %33 = tpu.dynamic_rotate %1 by %c1_i32 dim 1 : vector<32x256xf32>, i32 -> vector<32x256xf32>
    %34 = vector.shape_cast %32 : vector<1x256xi1> to vector<1x256xi1>
    %35 = vector.broadcast %34 : vector<1x256xi1> to vector<32x256xi1>
    %36 = arith.select %35, %1, %33 : vector<32x256xi1>, vector<32x256xf32>
    %c3 = arith.constant 3 : index
    %c0_13 = arith.constant 0 : index
    %c0_14 = arith.constant 0 : index
    %37 = vector.load %arg2[%c3, %c0_13, %c0_14] : memref<5x32x32xbf16, #tpu.memory_space<vmem>>, vector<1x32x32xbf16>
    %38 = vector.shape_cast %37 : vector<1x32x32xbf16> to vector<32x32xbf16>
    %39 = arith.truncf %36 : vector<32x256xf32> to vector<32x256xbf16>
    %cst_15 = arith.constant dense<0.000000e+00> : vector<32x256xf32>
    %40 = tpu.matmul %38, %39, %cst_15 {dimension_numbers = #tpu.dot_dimension_numbers<[1], [0], [0], [1], [0, 0, 1, 1], [], []>} : vector<32x32xbf16>, vector<32x256xbf16>, vector<32x256xf32> -> vector<32x256xf32>
    %41 = arith.addf %30, %40 : vector<32x256xf32>
    %c15_i32_16 = arith.constant 15 : i32
    %42 = vector.broadcast %c15_i32_16 : i32 to vector<1x256xi32>
    %43 = arith.cmpi eq, %4, %42 : vector<1x256xi32>
    %c255_i32 = arith.constant 255 : i32
    %44 = tpu.dynamic_rotate %1 by %c255_i32 dim 1 : vector<32x256xf32>, i32 -> vector<32x256xf32>
    %45 = vector.shape_cast %43 : vector<1x256xi1> to vector<1x256xi1>
    %46 = vector.broadcast %45 : vector<1x256xi1> to vector<32x256xi1>
    %47 = arith.select %46, %1, %44 : vector<32x256xi1>, vector<32x256xf32>
    %c4 = arith.constant 4 : index
    %c0_17 = arith.constant 0 : index
    %c0_18 = arith.constant 0 : index
    %48 = vector.load %arg2[%c4, %c0_17, %c0_18] : memref<5x32x32xbf16, #tpu.memory_space<vmem>>, vector<1x32x32xbf16>
    %49 = vector.shape_cast %48 : vector<1x32x32xbf16> to vector<32x32xbf16>
    %50 = arith.truncf %47 : vector<32x256xf32> to vector<32x256xbf16>
    %cst_19 = arith.constant dense<0.000000e+00> : vector<32x256xf32>
    %51 = tpu.matmul %49, %50, %cst_19 {dimension_numbers = #tpu.dot_dimension_numbers<[1], [0], [0], [1], [0, 0, 1, 1], [], []>} : vector<32x32xbf16>, vector<32x256xbf16>, vector<32x256xf32> -> vector<32x256xf32>
    %52 = arith.addf %41, %51 : vector<32x256xf32>
    %c0_20 = arith.constant 0 : index
    %c0_21 = arith.constant 0 : index
    %53 = vector.load %arg3[%c0_20, %c0_21] : memref<32x1xf32, #tpu.memory_space<vmem>>, vector<32x1xf32>
    %54 = vector.broadcast %53 : vector<32x1xf32> to vector<32x256xf32>
    %55 = arith.addf %52, %54 : vector<32x256xf32>
    %c0_22 = arith.constant 0 : index
    %c0_23 = arith.constant 0 : index
    %c0_24 = arith.constant 0 : index
    %56 = vector.load %arg4[%c0_22, %c0_23, %c0_24] : memref<1x32x256xf32, #tpu.memory_space<vmem>>, vector<1x32x256xf32>
    %57 = vector.shape_cast %56 : vector<1x32x256xf32> to vector<32x256xf32>
    %58 = vector.shape_cast %55 : vector<32x256xf32> to vector<1x32x256xf32>
    tpu.vector_store %arg4[%c0_22, %c0_23, %c0_24], %58 {strides = array<i32>} : memref<1x32x256xf32, #tpu.memory_space<vmem>>, vector<1x32x256xf32>,
    return
  }
  func.func @transform_0(%arg0: i32) -> (i32, i32, i32) {
    %c0_i32 = arith.constant 0 : i32
    %c0_i32_0 = arith.constant 0 : i32
    %c0_i32_1 = arith.constant 0 : i32
    return %arg0, %c0_i32, %c0_i32_0 : i32, i32, i32
  }
  func.func @transform_1(%arg0: i32) -> (i32, i32, i32) {
    %c0_i32 = arith.constant 0 : i32
    %c0_i32_0 = arith.constant 0 : i32
    %c0_i32_1 = arith.constant 0 : i32
    %c0_i32_2 = arith.constant 0 : i32
    return %c0_i32, %c0_i32_0, %c0_i32_1 : i32, i32, i32
  }
  func.func @transform_2(%arg0: i32) -> (i32, i32) {
    %c0_i32 = arith.constant 0 : i32
    %c0_i32_0 = arith.constant 0 : i32
    %c0_i32_1 = arith.constant 0 : i32
    return %c0_i32, %c0_i32_0 : i32, i32
  }
  func.func @transform_3(%arg0: i32) -> (i32, i32, i32) {
    %c0_i32 = arith.constant 0 : i32
    %c0_i32_0 = arith.constant 0 : i32
    %c0_i32_1 = arith.constant 0 : i32
    return %arg0, %c0_i32, %c0_i32_0 : i32, i32, i32
  }
}

</mosaic_0001>

<llo_original>
// kernel: tpu_custom_call.1
$region0: #{tpu_custom_call.1}
  #allocation0 [shape = 'u32[]', space=smem, size = 0x4, offset = 0x4, fixed_abs, tag = 'smem constant byte address 0x4 - core index']
  #allocation1 [shape = 'u32[144,128]{1,0:T(1,128)}', space=vmem, size = 0x12000, scoped, tag = 'internal scratch']
  %s0 = inlined_call_operand.hbm [shape: f32[2,32,256], index: 0, kind: input, shape index: {}]
  %s1 = inlined_call_operand.hbm [shape: bf16[5,32,32], index: 1, kind: input, shape index: {}]
  %s2 = inlined_call_operand.vmem [shape: f32[32,1], index: 2, kind: input, shape index: {}]
  %s3 = inlined_call_operand.hbm [shape: f32[2,32,256], index: 3, kind: output, shape index: {}]
  %s4 = sld [smem:[#allocation0]]
  $region53: #{tpu_custom_call.1} parent=0
    _
  %s6 = ssub.s32 1, %s4
  %s7 = scalar_select 0, %s6, %s4
  $region1: #{tpu_custom_call.1} parent=0
    #allocation2 [shape = 'u8[65536]{0}', space=vmem, size = 0x10000, scoped, tag = 'input window, operand 0']
    #allocation3 [shape = 's32[2]{0}', space=sflag, size = 0x8, scoped, tag = 'scoped memory for tpu_custom_call.1']
    #allocation4 [shape = 's32[2]{0}', space=sflag, size = 0x8, scoped, tag = 'scoped memory for tpu_custom_call.1']
    #allocation5 [shape = 'u8[40960]{0}', space=vmem, size = 0xa000, scoped, tag = 'input window, operand 1, single buffered']
    #allocation6 [shape = 's32[1]{0}', space=sflag, size = 0x4, scoped, tag = 'scoped memory for tpu_custom_call.1']
    #allocation7 [shape = 'u8[65536]{0}', space=vmem, size = 0x10000, scoped, tag = 'output window, operand 0']
    %8 = vsyncpa [#allocation3], 0
    %s9 = scalar_lea.sflag [#allocation3], 1
    %10 = vsyncpa %s9, 0
    %11 = vsyncpa [#allocation6], 0
    %12 = vsyncpa [#allocation4], 0
    %s13 = scalar_lea.sflag [#allocation4], 1
    %14 = vsyncpa %s13, 0
    loop: start=0, step=1, limit=4
    $region2: #{tpu_custom_call.1} parent=1 // loop_pre_header
      _
    $region3: #{tpu_custom_call.1} parent=1 // loop_header
      %s16 = sphi 0, %s20
      %p17 = scmp.ge.s32.totalorder %s16, 4
      %s26 = sphi 0, %s28
      %s29 = sphi 0, %s26
      %s30 = sphi 0, %s29
      %s46 = sphi 0, %s30
      %s50 = sphi 0, %s50
      %s52 = sphi 0, %s50
      %s53 = sphi 0, %s52
      %s67 = sphi 0, %s53
      %s71 = sphi 0, %s71
      %s73 = sphi 0, %s71
      %s74 = sphi 0, %s73
      %s88 = sphi 0, %s74
      %s94 = sphi 0, %s96
      %s97 = sphi 0, %s94
      %s98 = sphi 0, %s97
      %s114 = sphi 0, %s98
    $region4: #{tpu_custom_call.1} parent=1 // loop_header_branch
      %19 = sbr.rel (%p17) target = $region8
    $region5: #{tpu_custom_call.1} parent=1 // loop_body
      %s21 = ssub.s32 %s16, 1
      %s22 = ssub.s32 %s16, 2
      %s23 = sadd.s32 %s16, 1
      %s24 = ssub.s32 %s16, %s23
      %p25 = scmp.eq.s32.totalorder %s24, 0
      %s27 = sadd.s32 %s26, 1
      %s28 = scalar_select %p25, %s26, %s27
      %p31 = pneg %p25
      %p32 = scmp.eq.s32.totalorder %s16, 1
      %p33 = por %p31, %p32
      %p34 = scmp.ne.s32.totalorder %s26, %s29
      %p35 = scmp.eq.s32.totalorder %s16, 0
      %p36 = por %p34, %p35
      %p37 = scmp.ne.s32.totalorder %s26, %s29
      %p38 = scmp.eq.s32.totalorder %s21, 1
      %p39 = por %p37, %p38
      %p40 = scmp.ne.s32.totalorder %s29, %s30
      %p41 = scmp.eq.s32.totalorder %s21, 0
      %p42 = por %p40, %p41
      %p43 = scmp.ne.s32.totalorder %s29, %s30
      %p44 = scmp.eq.s32.totalorder %s22, 1
      %p45 = por %p43, %p44
      %p47 = scmp.ne.s32.totalorder %s30, %s46
      %p48 = scmp.eq.s32.totalorder %s22, 0
      %p49 = por %p47, %p48
      %s51 = sadd.s32 %s50, 1
      %p54 = scmp.eq.s32.totalorder %s16, 1
      %p55 = scmp.ne.s32.totalorder %s50, %s52
      %p56 = scmp.eq.s32.totalorder %s16, 0
      %p57 = por %p55, %p56
      %p58 = scmp.ne.s32.totalorder %s50, %s52
      %p59 = scmp.eq.s32.totalorder %s21, 1
      %p60 = por %p58, %p59
      %p61 = scmp.ne.s32.totalorder %s52, %s53
      %p62 = scmp.eq.s32.totalorder %s21, 0
      %p63 = por %p61, %p62
      %p64 = scmp.ne.s32.totalorder %s52, %s53
      %p65 = scmp.eq.s32.totalorder %s22, 1
      %p66 = por %p64, %p65
      %p68 = scmp.ne.s32.totalorder %s53, %s67
      %p69 = scmp.eq.s32.totalorder %s22, 0
      %p70 = por %p68, %p69
      %s72 = sadd.s32 %s71, 1
      %p75 = scmp.eq.s32.totalorder %s16, 1
      %p76 = scmp.ne.s32.totalorder %s71, %s73
      %p77 = scmp.eq.s32.totalorder %s16, 0
      %p78 = por %p76, %p77
      %p79 = scmp.ne.s32.totalorder %s71, %s73
      %p80 = scmp.eq.s32.totalorder %s21, 1
      %p81 = por %p79, %p80
      %p82 = scmp.ne.s32.totalorder %s73, %s74
      %p83 = scmp.eq.s32.totalorder %s21, 0
      %p84 = por %p82, %p83
      %p85 = scmp.ne.s32.totalorder %s73, %s74
      %p86 = scmp.eq.s32.totalorder %s22, 1
      %p87 = por %p85, %p86
      %p89 = scmp.ne.s32.totalorder %s74, %s88
      %p90 = scmp.eq.s32.totalorder %s22, 0
      %p91 = por %p89, %p90
      %s92 = ssub.s32 %s16, %s23
      %p93 = scmp.eq.s32.totalorder %s92, 0
      %s95 = sadd.s32 %s94, 1
      %s96 = scalar_select %p93, %s94, %s95
      %p99 = pneg %p93
      %p100 = scmp.eq.s32.totalorder %s16, 1
      %p101 = por %p99, %p100
      %p102 = scmp.ne.s32.totalorder %s94, %s97
      %p103 = scmp.eq.s32.totalorder %s16, 0
      %p104 = por %p102, %p103
      %p105 = scmp.ne.s32.totalorder %s94, %s97
      %p106 = scmp.eq.s32.totalorder %s21, 1
      %p107 = por %p105, %p106
      %p108 = scmp.ne.s32.totalorder %s97, %s98
      %p109 = scmp.eq.s32.totalorder %s21, 0
      %p110 = por %p108, %p109
      %p111 = scmp.ne.s32.totalorder %s97, %s98
      %p112 = scmp.eq.s32.totalorder %s22, 1
      %p113 = por %p111, %p112
      %p115 = scmp.ne.s32.totalorder %s98, %s114
      %p116 = scmp.eq.s32.totalorder %s22, 0
      %p117 = por %p115, %p116
      %p118 = scmp.le.s32.totalorder 1, %s16
      %p119 = scmp.lt.s32.totalorder %s16, 3
      %p120 = pnand %p118, %p119
      %p121 = pneg %p120
      // Predicated region
      $region9: #{tpu_custom_call.1} parent=5 // pred_check
        _
      $region10: #{tpu_custom_call.1} parent=5 // pred_check_branch
        %123 = sbr.rel (%p120) target = $region12
      $region11: #{tpu_custom_call.1} parent=5 // pred_region
        %s124 = ssub.s32 %s16, 1
        // Predicated region
        $region13: #{tpu_custom_call.1} parent=11 // pred_check
          %p125 = pneg %p63
        $region14: #{tpu_custom_call.1} parent=11 // pred_check_branch
          %127 = sbr.rel (%p125) target = $region16
        $region15: #{tpu_custom_call.1} parent=11 // pred_region
          %s129 = ssub.s32 1280, 1280
          %130 = vsyncadd [#allocation6], %s129
          %s131 = sshll.u32 [#allocation5], 4
          %s132 = int_to_ptr.vmem [resolvable:$true] %s131
          %137 = dma.hbm_to_vmem [thread:$0]  %s1, 1280, %s132, [#allocation6], 64, 64, 4
        $region16: #{tpu_custom_call.1} parent=11 // pred_fallthru
          _
        // Predicated region
        $region17: #{tpu_custom_call.1} parent=11 // pred_check
          %p138 = pneg %p84
        $region18: #{tpu_custom_call.1} parent=11 // pred_check_branch
          %140 = sbr.rel (%p138) target = $region20
        $region19: #{tpu_custom_call.1} parent=11 // pred_region
          _
        $region20: #{tpu_custom_call.1} parent=11 // pred_fallthru
          _
      $region12: #{tpu_custom_call.1} parent=5 // pred_fallthru
        _
      %p141 = scmp.lt.s32.totalorder %s16, 2
      // Predicated region
      $region21: #{tpu_custom_call.1} parent=5 // pred_check
        %p142 = pneg %p141
      $region22: #{tpu_custom_call.1} parent=5 // pred_check_branch
        %144 = sbr.rel (%p142) target = $region24
      $region23: #{tpu_custom_call.1} parent=5 // pred_region
        // Predicated region
        $region25: #{tpu_custom_call.1} parent=23 // pred_check
          %p145 = pneg %p36
        $region26: #{tpu_custom_call.1} parent=23 // pred_check_branch
          %147 = sbr.rel (%p145) target = $region28
        $region27: #{tpu_custom_call.1} parent=23 // pred_region
          %s148 = sand.u32 %s26, 1
          %s149 = scalar_lea.sflag [#allocation3], %s148
          %s150 = sand.u32 %s26, 1
          %s151 = smul.addr %s150, 64
          %s152 = scalar_lea.vmem [#allocation2], %s151
          %s154 = ssub.s32 1024, 1024
          %155 = vsyncadd %s149, %s154
          %s156 = smul.addr %s16, 8
          %s157 = smul.addr %s156, 128
          %s158 = scalar_lea.hbm %s0, %s157
          %s159 = sshll.u32 %s152, 4
          %s160 = int_to_ptr.vmem [resolvable:$true] %s159
          %165 = dma.hbm_to_vmem [thread:$0]  %s158, 1024, %s160, %s149, 256, 256, 16
        $region28: #{tpu_custom_call.1} parent=23 // pred_fallthru
          _
      $region24: #{tpu_custom_call.1} parent=5 // pred_fallthru
        _
      %p166 = scmp.le.s32.totalorder 1, %s16
      %p167 = scmp.lt.s32.totalorder %s16, 3
      %p168 = pnand %p166, %p167
      %p169 = pneg %p168
      // Predicated region
      $region29: #{tpu_custom_call.1} parent=5 // pred_check
        _
      $region30: #{tpu_custom_call.1} parent=5 // pred_check_branch
        %171 = sbr.rel (%p168) target = $region32
      $region31: #{tpu_custom_call.1} parent=5 // pred_region
        %s172 = ssub.s32 %s16, 1
        %s173 = sand.u32 %s29, 1
        %s174 = scalar_lea.sflag [#allocation3], %s173
        %s175 = sand.u32 %s29, 1
        %s176 = smul.addr %s175, 64
        %s177 = scalar_lea.vmem [#allocation2], %s176
        // Predicated region
        $region33: #{tpu_custom_call.1} parent=31 // pred_check
          %p178 = pneg %p42
        $region34: #{tpu_custom_call.1} parent=31 // pred_check_branch
          %180 = sbr.rel (%p178) target = $region36
        $region35: #{tpu_custom_call.1} parent=31 // pred_region
          %181 = dma.done %s174, 1024
        $region36: #{tpu_custom_call.1} parent=31 // pred_fallthru
          _
        // Predicated region
        $region37: #{tpu_custom_call.1} parent=31 // pred_check
          %p182 = pneg %p63
        $region38: #{tpu_custom_call.1} parent=31 // pred_check_branch
          %184 = sbr.rel (%p182) target = $region40
        $region39: #{tpu_custom_call.1} parent=31 // pred_region
          %185 = dma.done [#allocation6], 1280
        $region40: #{tpu_custom_call.1} parent=31 // pred_fallthru
          _
        %s186 = sand.u32 %s29, 1
        %s187 = scalar_lea.sflag [#allocation3], %s186
        %s188 = sand.u32 %s29, 1
        %s189 = smul.addr %s188, 64
        %s190 = scalar_lea.vmem [#allocation2], %s189
        %p191 = pneg %p42
        %p192 = pneg %p39
        %p193 = pneg %p63
        %p194 = pneg %p60
        %p195 = pneg %p84
        %p196 = pneg %p81
        %p197 = pneg %p110
        %p198 = pneg %p107
        %s199 = sand.u32 %s97, 1
        %s200 = scalar_lea.sflag [#allocation4], %s199
        %s201 = sand.u32 %s97, 1
        %s202 = smul.addr %s201, 64
        %s203 = scalar_lea.vmem [#allocation7], %s202
        %v205 = vld [vmem:[%s177] sm:$0xff]
        %v206 = vld [vmem:[%s177 + $0x8] sm:$0xff]
        %v207 = vld [vmem:[%s177 + $0x10] sm:$0xff]
        %v208 = vld [vmem:[%s177 + $0x18] sm:$0xff]
        %v209 = vld [vmem:[%s177 + $0x20] sm:$0xff]
        %v210 = vld [vmem:[%s177 + $0x28] sm:$0xff]
        %v211 = vld [vmem:[%s177 + $0x30] sm:$0xff]
        %v212 = vld [vmem:[%s177 + $0x38] sm:$0xff]
        %v213 = vlaneseq
        %v214 = vand.u32 %v213, 127
        %v215 = vadd.s32 %v214, 128
        %v216 = vand.u32 %v214, 15
        %v217 = vand.u32 %v215, 15
        %v218 = vld [vmem:[#allocation5] sm:$0xf]
        %v219 = vld [vmem:[#allocation5 + $0x4] sm:$0xf]
        %v220 = vld [vmem:[#allocation5 + $0x8] sm:$0xf]
        %v221 = vld [vmem:[#allocation5 + $0xc] sm:$0xf]
        %v222 = vpack.c.bf16 %v207, %v205
        %v223 = vpack.c.bf16 %v208, %v206
        %v224 = vpack.c.bf16 %v211, %v209
        %v225 = vpack.c.bf16 %v212, %v210
        %vm226 = vcmp.lt.s32.totalorder %v214, 16
        %vm227 = vcmp.lt.s32.totalorder %v215, 16
        %228 = vrot.lane.b32.xlu0 %v205, 16
        %v229 = vpop.permute.xlu0 %228
        %230 = vrot.lane.b32.xlu0 %v207, 16
        %v231 = vpop.permute.xlu0 %230
        %232 = vrot.lane.b32.xlu0 %v209, 16
        %v233 = vpop.permute.xlu0 %232
        %234 = vrot.lane.b32.xlu0 %v211, 16
        %v235 = vpop.permute.xlu0 %234
        %236 = vrot.lane.b32.xlu0 %v206, 16
        %v237 = vpop.permute.xlu0 %236
        %238 = vrot.lane.b32.xlu0 %v208, 16
        %v239 = vpop.permute.xlu0 %238
        %240 = vrot.lane.b32.xlu0 %v210, 16
        %v241 = vpop.permute.xlu0 %240
        %242 = vrot.lane.b32.xlu0 %v212, 16
        %v243 = vpop.permute.xlu0 %242
        %v244 = vsel %vm226, %v229, %v237
        %v245 = vsel %vm226, %v231, %v239
        %v246 = vsel %vm226, %v233, %v241
        %v247 = vsel %vm226, %v235, %v243
        %v248 = vsel %vm226, %v237, %v229
        %v249 = vsel %vm226, %v239, %v231
        %v250 = vsel %vm226, %v241, %v233
        %v251 = vsel %vm226, %v243, %v235
        %v252 = vsel %vm226, 1, 0
        %v253 = vsel %vm227, 1, 0
        %vm254 = vcmp.eq.s32.totalorder %v252, 1
        %vm255 = vcmp.eq.s32.totalorder %v253, 1
        %v256 = vsel %vm254, %v205, %v248
        %v257 = vsel %vm255, %v206, %v244
        %v258 = vsel %vm254, %v207, %v249
        %v259 = vsel %vm255, %v208, %v245
        %v260 = vsel %vm254, %v209, %v250
        %v261 = vsel %vm255, %v210, %v246
        %v262 = vsel %vm254, %v211, %v251
        %v263 = vsel %vm255, %v212, %v247
        %s264 = scalar_lea.vmem [#allocation5], 16
        %v265 = vld [vmem:[%s264] sm:$0xf]
        %v266 = vld [vmem:[%s264 + $0x4] sm:$0xf]
        %v267 = vld [vmem:[%s264 + $0x8] sm:$0xf]
        %v268 = vld [vmem:[%s264 + $0xc] sm:$0xf]
        %v269 = vpack.c.bf16 %v258, %v256
        %v270 = vpack.c.bf16 %v259, %v257
        %v271 = vpack.c.bf16 %v262, %v260
        %v272 = vpack.c.bf16 %v263, %v261
        %v277 = vunpack.c.l.b16 %v265
        %v278 = vunpack.c.l.b16 %v266
        %v279 = vunpack.c.l.b16 %v267
        %v280 = vunpack.c.l.b16 %v268
        %v281 = vpack.c.b16 %v278, %v277
        %v282 = vpack.c.b16 %v280, %v279
        %vm283 = vcmask 261120
        %v285 = vsel %vm283, %v281, 0
        %v288 = vsel %vm283, %v282, 0
        %290 = vmatprep.subr.bf16.mxu0 %v270
        %291 = vmatpush1.bf16.msra.mxu0 %v269
        %292 = vmatprep.subr.bf16.mxu0 %v272
        %293 = vmatpush1.bf16.msra.mxu0 %v271
        %294 = vmatprep.subr.bf16.mxu0 0
        %295 = vmatpush1.bf16.msra.mxu0 0
        %296 = vmatprep.subr.bf16.mxu0 0
        %297 = vmatpush1.bf16.msra.mxu0 0
        %298 = vmatprep.subr.bf16.mxu0 0
        %299 = vmatpush1.bf16.msra.mxu0 0
        %300 = vmatprep.subr.bf16.mxu0 0
        %301 = vmatpush1.bf16.msra.mxu0 0
        %302 = vmatprep.subr.bf16.mxu0 0
        %303 = vmatpush1.bf16.msra.mxu0 0
        %304 = vmatprep.subr.bf16.mxu0 0
        %305 = vmatpush1.bf16.msra.mxu0 0
        %306 = vmatprep.subr.bf16.mxu0 0
        %307 = vmatpush1.bf16.msra.mxu0 0
        %308 = vmatprep.subr.bf16.mxu0 0
        %309 = vmatpush1.bf16.msra.mxu0 0
        %310 = vmatprep.subr.bf16.mxu0 0
        %311 = vmatpush1.bf16.msra.mxu0 0
        %312 = vmatprep.subr.bf16.mxu0 0
        %313 = vmatpush1.bf16.msra.mxu0 0
        %314 = vmatprep.subr.bf16.mxu0 0
        %315 = vmatpush1.bf16.msra.mxu0 0
        %316 = vmatprep.subr.bf16.mxu0 0
        %317 = vmatpush1.bf16.msra.mxu0 0
        %318 = vmatprep.subr.bf16.mxu0 0
        %319 = vmatpush1.bf16.msra.mxu0 0
        %320 = vmatprep.subr.bf16.mxu0 0
        %321 = vmatpush1.bf16.msra.mxu0 0
        %322 = vmatprep.mubr.bf16.mxu0 0
        %323 = vmatmul.mubr.bf16.gmra.mrb[0].mxu0 %v285
        %v324 = vpop.f32.mrb[0].mxu0
        %v325 = vadd.f32 0.0, %v324
        %v326 = vpop.f32.mrb[0].mxu0
        %v327 = vadd.f32 0.0, %v326
        %v328 = vpop.f32.mrb[0].mxu0
        %v329 = vadd.f32 0.0, %v328
        %v330 = vpop.f32.mrb[0].mxu0
        %v331 = vadd.f32 0.0, %v330
        %332 = vmatprep.mubr.bf16.mxu0 0
        %333 = vmatmul.mubr.bf16.gmra.mrb[0].mxu0 %v288
        %v334 = vpop.f32.mrb[0].mxu0
        %v335 = vadd.f32 0.0, %v334
        %v336 = vpop.f32.mrb[0].mxu0
        %v337 = vadd.f32 0.0, %v336
        %v338 = vpop.f32.mrb[0].mxu0
        %v339 = vadd.f32 0.0, %v338
        %v340 = vpop.f32.mrb[0].mxu0
        %v341 = vadd.f32 0.0, %v340
        %342 = vdwg.mxu0
        %v347 = vunpack.c.l.b16 %v218
        %v348 = vunpack.c.l.b16 %v219
        %v349 = vunpack.c.l.b16 %v220
        %v350 = vunpack.c.l.b16 %v221
        %v351 = vpack.c.b16 %v348, %v347
        %v352 = vpack.c.b16 %v350, %v349
        %v354 = vsel %vm283, %v351, 0
        %v357 = vsel %vm283, %v352, 0
        %359 = vmatprep.subr.bf16.mxu0 %v223
        %360 = vmatpush1.bf16.msra.mxu0 %v222
        %361 = vmatprep.subr.bf16.mxu0 %v225
        %362 = vmatpush1.bf16.msra.mxu0 %v224
        %363 = vmatprep.subr.bf16.mxu0 0
        %364 = vmatpush1.bf16.msra.mxu0 0
        %365 = vmatprep.subr.bf16.mxu0 0
        %366 = vmatpush1.bf16.msra.mxu0 0
        %367 = vmatprep.subr.bf16.mxu0 0
        %368 = vmatpush1.bf16.msra.mxu0 0
        %369 = vmatprep.subr.bf16.mxu0 0
        %370 = vmatpush1.bf16.msra.mxu0 0
        %371 = vmatprep.subr.bf16.mxu0 0
        %372 = vmatpush1.bf16.msra.mxu0 0
        %373 = vmatprep.subr.bf16.mxu0 0
        %374 = vmatpush1.bf16.msra.mxu0 0
        %375 = vmatprep.subr.bf16.mxu0 0
        %376 = vmatpush1.bf16.msra.mxu0 0
        %377 = vmatprep.subr.bf16.mxu0 0
        %378 = vmatpush1.bf16.msra.mxu0 0
        %379 = vmatprep.subr.bf16.mxu0 0
        %380 = vmatpush1.bf16.msra.mxu0 0
        %381 = vmatprep.subr.bf16.mxu0 0
        %382 = vmatpush1.bf16.msra.mxu0 0
        %383 = vmatprep.subr.bf16.mxu0 0
        %384 = vmatpush1.bf16.msra.mxu0 0
        %385 = vmatprep.subr.bf16.mxu0 0
        %386 = vmatpush1.bf16.msra.mxu0 0
        %387 = vmatprep.subr.bf16.mxu0 0
        %388 = vmatpush1.bf16.msra.mxu0 0
        %389 = vmatprep.subr.bf16.mxu0 0
        %390 = vmatpush1.bf16.msra.mxu0 0
        %391 = vmatprep.mubr.bf16.mxu0 0
        %392 = vmatmul.mubr.bf16.gmra.mrb[0].mxu0 %v354
        %v393 = vpop.f32.mrb[0].mxu0
        %v394 = vadd.f32 %v325, %v393
        %v395 = vpop.f32.mrb[0].mxu0
        %v396 = vadd.f32 %v327, %v395
        %v397 = vpop.f32.mrb[0].mxu0
        %v398 = vadd.f32 %v329, %v397
        %v399 = vpop.f32.mrb[0].mxu0
        %v400 = vadd.f32 %v331, %v399
        %401 = vmatprep.mubr.bf16.mxu0 0
        %402 = vmatmul.mubr.bf16.gmra.mrb[0].mxu0 %v357
        %v403 = vpop.f32.mrb[0].mxu0
        %v404 = vadd.f32 %v335, %v403
        %v405 = vpop.f32.mrb[0].mxu0
        %v406 = vadd.f32 %v337, %v405
        %v407 = vpop.f32.mrb[0].mxu0
        %v408 = vadd.f32 %v339, %v407
        %v409 = vpop.f32.mrb[0].mxu0
        %v410 = vadd.f32 %v341, %v409
        %411 = vdwg.mxu0
        %vm412 = vcmp.ge.s32.totalorder %v214, 240
        %vm413 = vcmp.ge.s32.totalorder %v215, 240
        %414 = vrot.lane.b32.xlu0 %v205, 112
        %v415 = vpop.permute.xlu0 %414
        %416 = vrot.lane.b32.xlu0 %v207, 112
        %v417 = vpop.permute.xlu0 %416
        %418 = vrot.lane.b32.xlu0 %v209, 112
        %v419 = vpop.permute.xlu0 %418
        %420 = vrot.lane.b32.xlu0 %v211, 112
        %v421 = vpop.permute.xlu0 %420
        %422 = vrot.lane.b32.xlu0 %v206, 112
        %v423 = vpop.permute.xlu0 %422
        %424 = vrot.lane.b32.xlu0 %v208, 112
        %v425 = vpop.permute.xlu0 %424
        %426 = vrot.lane.b32.xlu0 %v210, 112
        %v427 = vpop.permute.xlu0 %426
        %428 = vrot.lane.b32.xlu0 %v212, 112
        %v429 = vpop.permute.xlu0 %428
        %vm430 = vcmp.lt.s32.totalorder %v214, 112
        %v431 = vsel %vm430, %v415, %v423
        %v432 = vsel %vm430, %v417, %v425
        %v433 = vsel %vm430, %v419, %v427
        %v434 = vsel %vm430, %v421, %v429
        %v435 = vsel %vm430, %v423, %v415
        %v436 = vsel %vm430, %v425, %v417
        %v437 = vsel %vm430, %v427, %v419
        %v438 = vsel %vm430, %v429, %v421
        %v439 = vsel %vm412, 1, 0
        %v440 = vsel %vm413, 1, 0
        %vm441 = vcmp.eq.s32.totalorder %v439, 1
        %vm442 = vcmp.eq.s32.totalorder %v440, 1
        %v443 = vsel %vm441, %v205, %v431
        %v444 = vsel %vm442, %v206, %v435
        %v445 = vsel %vm441, %v207, %v432
        %v446 = vsel %vm442, %v208, %v436
        %v447 = vsel %vm441, %v209, %v433
        %v448 = vsel %vm442, %v210, %v437
        %v449 = vsel %vm441, %v211, %v434
        %v450 = vsel %vm442, %v212, %v438
        %s451 = scalar_lea.vmem [#allocation5], 32
        %v452 = vld [vmem:[%s451] sm:$0xf]
        %v453 = vld [vmem:[%s451 + $0x4] sm:$0xf]
        %v454 = vld [vmem:[%s451 + $0x8] sm:$0xf]
        %v455 = vld [vmem:[%s451 + $0xc] sm:$0xf]
        %v456 = vpack.c.bf16 %v445, %v443
        %v457 = vpack.c.bf16 %v446, %v444
        %v458 = vpack.c.bf16 %v449, %v447
        %v459 = vpack.c.bf16 %v450, %v448
        %v464 = vunpack.c.l.b16 %v452
        %v465 = vunpack.c.l.b16 %v453
        %v466 = vunpack.c.l.b16 %v454
        %v467 = vunpack.c.l.b16 %v455
        %v468 = vpack.c.b16 %v465, %v464
        %v469 = vpack.c.b16 %v467, %v466
        %v471 = vsel %vm283, %v468, 0
        %v474 = vsel %vm283, %v469, 0
        %476 = vmatprep.subr.bf16.mxu0 %v457
        %477 = vmatpush1.bf16.msra.mxu0 %v456
        %478 = vmatprep.subr.bf16.mxu0 %v459
        %479 = vmatpush1.bf16.msra.mxu0 %v458
        %480 = vmatprep.subr.bf16.mxu0 0
        %481 = vmatpush1.bf16.msra.mxu0 0
        %482 = vmatprep.subr.bf16.mxu0 0
        %483 = vmatpush1.bf16.msra.mxu0 0
        %484 = vmatprep.subr.bf16.mxu0 0
        %485 = vmatpush1.bf16.msra.mxu0 0
        %486 = vmatprep.subr.bf16.mxu0 0
        %487 = vmatpush1.bf16.msra.mxu0 0
        %488 = vmatprep.subr.bf16.mxu0 0
        %489 = vmatpush1.bf16.msra.mxu0 0
        %490 = vmatprep.subr.bf16.mxu0 0
        %491 = vmatpush1.bf16.msra.mxu0 0
        %492 = vmatprep.subr.bf16.mxu0 0
        %493 = vmatpush1.bf16.msra.mxu0 0
        %494 = vmatprep.subr.bf16.mxu0 0
        %495 = vmatpush1.bf16.msra.mxu0 0
        %496 = vmatprep.subr.bf16.mxu0 0
        %497 = vmatpush1.bf16.msra.mxu0 0
        %498 = vmatprep.subr.bf16.mxu0 0
        %499 = vmatpush1.bf16.msra.mxu0 0
        %500 = vmatprep.subr.bf16.mxu0 0
        %501 = vmatpush1.bf16.msra.mxu0 0
        %502 = vmatprep.subr.bf16.mxu0 0
        %503 = vmatpush1.bf16.msra.mxu0 0
        %504 = vmatprep.subr.bf16.mxu0 0
        %505 = vmatpush1.bf16.msra.mxu0 0
        %506 = vmatprep.subr.bf16.mxu0 0
        %507 = vmatpush1.bf16.msra.mxu0 0
        %508 = vmatprep.mubr.bf16.mxu0 0
        %509 = vmatmul.mubr.bf16.gmra.mrb[0].mxu0 %v471
        %v510 = vpop.f32.mrb[0].mxu0
        %v511 = vadd.f32 0.0, %v510
        %v512 = vpop.f32.mrb[0].mxu0
        %v513 = vadd.f32 0.0, %v512
        %v514 = vpop.f32.mrb[0].mxu0
        %v515 = vadd.f32 0.0, %v514
        %v516 = vpop.f32.mrb[0].mxu0
        %v517 = vadd.f32 0.0, %v516
        %518 = vmatprep.mubr.bf16.mxu0 0
        %519 = vmatmul.mubr.bf16.gmra.mrb[0].mxu0 %v474
        %v520 = vpop.f32.mrb[0].mxu0
        %v521 = vadd.f32 0.0, %v520
        %v522 = vpop.f32.mrb[0].mxu0
        %v523 = vadd.f32 0.0, %v522
        %v524 = vpop.f32.mrb[0].mxu0
        %v525 = vadd.f32 0.0, %v524
        %v526 = vpop.f32.mrb[0].mxu0
        %v527 = vadd.f32 0.0, %v526
        %528 = vdwg.mxu0
        %v529 = vadd.f32 %v394, %v511
        %v530 = vadd.f32 %v396, %v513
        %v531 = vadd.f32 %v398, %v515
        %v532 = vadd.f32 %v400, %v517
        %v533 = vadd.f32 %v404, %v521
        %v534 = vadd.f32 %v406, %v523
        %v535 = vadd.f32 %v408, %v525
        %v536 = vadd.f32 %v410, %v527
        %vm537 = vcmp.eq.s32.totalorder %v216, 0
        %vm538 = vcmp.eq.s32.totalorder %v217, 0
        %539 = vrot.lane.b32.xlu0 %v205, 1
        %v540 = vpop.permute.xlu0 %539
        %541 = vrot.lane.b32.xlu0 %v207, 1
        %v542 = vpop.permute.xlu0 %541
        %543 = vrot.lane.b32.xlu0 %v209, 1
        %v544 = vpop.permute.xlu0 %543
        %545 = vrot.lane.b32.xlu0 %v211, 1
        %v546 = vpop.permute.xlu0 %545
        %547 = vrot.lane.b32.xlu0 %v206, 1
        %v548 = vpop.permute.xlu0 %547
        %549 = vrot.lane.b32.xlu0 %v208, 1
        %v550 = vpop.permute.xlu0 %549
        %551 = vrot.lane.b32.xlu0 %v210, 1
        %v552 = vpop.permute.xlu0 %551
        %553 = vrot.lane.b32.xlu0 %v212, 1
        %v554 = vpop.permute.xlu0 %553
        %vm555 = vcmp.lt.s32.totalorder %v214, 1
        %v556 = vsel %vm555, %v540, %v548
        %v557 = vsel %vm555, %v542, %v550
        %v558 = vsel %vm555, %v544, %v552
        %v559 = vsel %vm555, %v546, %v554
        %v560 = vsel %vm555, %v548, %v540
        %v561 = vsel %vm555, %v550, %v542
        %v562 = vsel %vm555, %v552, %v544
        %v563 = vsel %vm555, %v554, %v546
        %v564 = vsel %vm537, 1, 0
        %v565 = vsel %vm538, 1, 0
        %vm566 = vcmp.eq.s32.totalorder %v564, 1
        %vm567 = vcmp.eq.s32.totalorder %v565, 1
        %v568 = vsel %vm566, %v205, %v560
        %v569 = vsel %vm567, %v206, %v556
        %v570 = vsel %vm566, %v207, %v561
        %v571 = vsel %vm567, %v208, %v557
        %v572 = vsel %vm566, %v209, %v562
        %v573 = vsel %vm567, %v210, %v558
        %v574 = vsel %vm566, %v211, %v563
        %v575 = vsel %vm567, %v212, %v559
        %s576 = scalar_lea.vmem [#allocation5], 48
        %v577 = vld [vmem:[%s576] sm:$0xf]
        %v578 = vld [vmem:[%s576 + $0x4] sm:$0xf]
        %v579 = vld [vmem:[%s576 + $0x8] sm:$0xf]
        %v580 = vld [vmem:[%s576 + $0xc] sm:$0xf]
        %v581 = vpack.c.bf16 %v570, %v568
        %v582 = vpack.c.bf16 %v571, %v569
        %v583 = vpack.c.bf16 %v574, %v572
        %v584 = vpack.c.bf16 %v575, %v573
        %v589 = vunpack.c.l.b16 %v577
        %v590 = vunpack.c.l.b16 %v578
        %v591 = vunpack.c.l.b16 %v579
        %v592 = vunpack.c.l.b16 %v580
        %v593 = vpack.c.b16 %v590, %v589
        %v594 = vpack.c.b16 %v592, %v591
        %v596 = vsel %vm283, %v593, 0
        %v599 = vsel %vm283, %v594, 0
        %601 = vmatprep.subr.bf16.mxu0 %v582
        %602 = vmatpush1.bf16.msra.mxu0 %v581
        %603 = vmatprep.subr.bf16.mxu0 %v584
        %604 = vmatpush1.bf16.msra.mxu0 %v583
        %605 = vmatprep.subr.bf16.mxu0 0
        %606 = vmatpush1.bf16.msra.mxu0 0
        %607 = vmatprep.subr.bf16.mxu0 0
        %608 = vmatpush1.bf16.msra.mxu0 0
        %609 = vmatprep.subr.bf16.mxu0 0
        %610 = vmatpush1.bf16.msra.mxu0 0
        %611 = vmatprep.subr.bf16.mxu0 0
        %612 = vmatpush1.bf16.msra.mxu0 0
        %613 = vmatprep.subr.bf16.mxu0 0
        %614 = vmatpush1.bf16.msra.mxu0 0
        %615 = vmatprep.subr.bf16.mxu0 0
        %616 = vmatpush1.bf16.msra.mxu0 0
        %617 = vmatprep.subr.bf16.mxu0 0
        %618 = vmatpush1.bf16.msra.mxu0 0
        %619 = vmatprep.subr.bf16.mxu0 0
        %620 = vmatpush1.bf16.msra.mxu0 0
        %621 = vmatprep.subr.bf16.mxu0 0
        %622 = vmatpush1.bf16.msra.mxu0 0
        %623 = vmatprep.subr.bf16.mxu0 0
        %624 = vmatpush1.bf16.msra.mxu0 0
        %625 = vmatprep.subr.bf16.mxu0 0
        %626 = vmatpush1.bf16.msra.mxu0 0
        %627 = vmatprep.subr.bf16.mxu0 0
        %628 = vmatpush1.bf16.msra.mxu0 0
        %629 = vmatprep.subr.bf16.mxu0 0
        %630 = vmatpush1.bf16.msra.mxu0 0
        %631 = vmatprep.subr.bf16.mxu0 0
        %632 = vmatpush1.bf16.msra.mxu0 0
        %633 = vmatprep.mubr.bf16.mxu0 0
        %634 = vmatmul.mubr.bf16.gmra.mrb[0].mxu0 %v596
        %v635 = vpop.f32.mrb[0].mxu0
        %v636 = vadd.f32 0.0, %v635
        %v637 = vpop.f32.mrb[0].mxu0
        %v638 = vadd.f32 0.0, %v637
        %v639 = vpop.f32.mrb[0].mxu0
        %v640 = vadd.f32 0.0, %v639
        %v641 = vpop.f32.mrb[0].mxu0
        %v642 = vadd.f32 0.0, %v641
        %643 = vmatprep.mubr.bf16.mxu0 0
        %644 = vmatmul.mubr.bf16.gmra.mrb[0].mxu0 %v599
        %v645 = vpop.f32.mrb[0].mxu0
        %v646 = vadd.f32 0.0, %v645
        %v647 = vpop.f32.mrb[0].mxu0
        %v648 = vadd.f32 0.0, %v647
        %v649 = vpop.f32.mrb[0].mxu0
        %v650 = vadd.f32 0.0, %v649
        %v651 = vpop.f32.mrb[0].mxu0
        %v652 = vadd.f32 0.0, %v651
        %653 = vdwg.mxu0
        %v654 = vadd.f32 %v529, %v636
        %v655 = vadd.f32 %v530, %v638
        %v656 = vadd.f32 %v531, %v640
        %v657 = vadd.f32 %v532, %v642
        %v658 = vadd.f32 %v533, %v646
        %v659 = vadd.f32 %v534, %v648
        %v660 = vadd.f32 %v535, %v650
        %v661 = vadd.f32 %v536, %v652
        %vm662 = vcmp.eq.s32.totalorder %v216, 15
        %vm663 = vcmp.eq.s32.totalorder %v217, 15
        %664 = vrot.lane.b32.xlu0 %v205, 127
        %v665 = vpop.permute.xlu0 %664
        %666 = vrot.lane.b32.xlu0 %v207, 127
        %v667 = vpop.permute.xlu0 %666
        %668 = vrot.lane.b32.xlu0 %v209, 127
        %v669 = vpop.permute.xlu0 %668
        %670 = vrot.lane.b32.xlu0 %v211, 127
        %v671 = vpop.permute.xlu0 %670
        %672 = vrot.lane.b32.xlu0 %v206, 127
        %v673 = vpop.permute.xlu0 %672
        %674 = vrot.lane.b32.xlu0 %v208, 127
        %v675 = vpop.permute.xlu0 %674
        %676 = vrot.lane.b32.xlu0 %v210, 127
        %v677 = vpop.permute.xlu0 %676
        %678 = vrot.lane.b32.xlu0 %v212, 127
        %v679 = vpop.permute.xlu0 %678
        %vm680 = vcmp.lt.s32.totalorder %v214, 127
        %v681 = vsel %vm680, %v665, %v673
        %v682 = vsel %vm680, %v667, %v675
        %v683 = vsel %vm680, %v669, %v677
        %v684 = vsel %vm680, %v671, %v679
        %v685 = vsel %vm680, %v673, %v665
        %v686 = vsel %vm680, %v675, %v667
        %v687 = vsel %vm680, %v677, %v669
        %v688 = vsel %vm680, %v679, %v671
        %v689 = vsel %vm662, 1, 0
        %v690 = vsel %vm663, 1, 0
        %vm691 = vcmp.eq.s32.totalorder %v689, 1
        %vm692 = vcmp.eq.s32.totalorder %v690, 1
        %v693 = vsel %vm691, %v205, %v681
        %v694 = vsel %vm692, %v206, %v685
        %v695 = vsel %vm691, %v207, %v682
        %v696 = vsel %vm692, %v208, %v686
        %v697 = vsel %vm691, %v209, %v683
        %v698 = vsel %vm692, %v210, %v687
        %v699 = vsel %vm691, %v211, %v684
        %v700 = vsel %vm692, %v212, %v688
        %s701 = scalar_lea.vmem [#allocation5], 64
        %v702 = vld [vmem:[%s701] sm:$0xf]
        %v703 = vld [vmem:[%s701 + $0x4] sm:$0xf]
        %v704 = vld [vmem:[%s701 + $0x8] sm:$0xf]
        %v705 = vld [vmem:[%s701 + $0xc] sm:$0xf]
        %v706 = vpack.c.bf16 %v695, %v693
        %v707 = vpack.c.bf16 %v696, %v694
        %v708 = vpack.c.bf16 %v699, %v697
        %v709 = vpack.c.bf16 %v700, %v698
        %v714 = vunpack.c.l.b16 %v702
        %v715 = vunpack.c.l.b16 %v703
        %v716 = vunpack.c.l.b16 %v704
        %v717 = vunpack.c.l.b16 %v705
        %v718 = vpack.c.b16 %v715, %v714
        %v719 = vpack.c.b16 %v717, %v716
        %v721 = vsel %vm283, %v718, 0
        %v724 = vsel %vm283, %v719, 0
        %726 = vmatprep.subr.bf16.mxu0 %v707
        %727 = vmatpush1.bf16.msra.mxu0 %v706
        %728 = vmatprep.subr.bf16.mxu0 %v709
        %729 = vmatpush1.bf16.msra.mxu0 %v708
        %730 = vmatprep.subr.bf16.mxu0 0
        %731 = vmatpush1.bf16.msra.mxu0 0
        %732 = vmatprep.subr.bf16.mxu0 0
        %733 = vmatpush1.bf16.msra.mxu0 0
        %734 = vmatprep.subr.bf16.mxu0 0
        %735 = vmatpush1.bf16.msra.mxu0 0
        %736 = vmatprep.subr.bf16.mxu0 0
        %737 = vmatpush1.bf16.msra.mxu0 0
        %738 = vmatprep.subr.bf16.mxu0 0
        %739 = vmatpush1.bf16.msra.mxu0 0
        %740 = vmatprep.subr.bf16.mxu0 0
        %741 = vmatpush1.bf16.msra.mxu0 0
        %742 = vmatprep.subr.bf16.mxu0 0
        %743 = vmatpush1.bf16.msra.mxu0 0
        %744 = vmatprep.subr.bf16.mxu0 0
        %745 = vmatpush1.bf16.msra.mxu0 0
        %746 = vmatprep.subr.bf16.mxu0 0
        %747 = vmatpush1.bf16.msra.mxu0 0
        %748 = vmatprep.subr.bf16.mxu0 0
        %749 = vmatpush1.bf16.msra.mxu0 0
        %750 = vmatprep.subr.bf16.mxu0 0
        %751 = vmatpush1.bf16.msra.mxu0 0
        %752 = vmatprep.subr.bf16.mxu0 0
        %753 = vmatpush1.bf16.msra.mxu0 0
        %754 = vmatprep.subr.bf16.mxu0 0
        %755 = vmatpush1.bf16.msra.mxu0 0
        %756 = vmatprep.subr.bf16.mxu0 0
        %757 = vmatpush1.bf16.msra.mxu0 0
        %758 = vmatprep.mubr.bf16.mxu0 0
        %759 = vmatmul.mubr.bf16.gmra.mrb[0].mxu0 %v721
        %v760 = vpop.f32.mrb[0].mxu0
        %v761 = vadd.f32 0.0, %v760
        %v762 = vpop.f32.mrb[0].mxu0
        %v763 = vadd.f32 0.0, %v762
        %v764 = vpop.f32.mrb[0].mxu0
        %v765 = vadd.f32 0.0, %v764
        %v766 = vpop.f32.mrb[0].mxu0
        %v767 = vadd.f32 0.0, %v766
        %768 = vmatprep.mubr.bf16.mxu0 0
        %769 = vmatmul.mubr.bf16.gmra.mrb[0].mxu0 %v724
        %v770 = vpop.f32.mrb[0].mxu0
        %v771 = vadd.f32 0.0, %v770
        %v772 = vpop.f32.mrb[0].mxu0
        %v773 = vadd.f32 0.0, %v772
        %v774 = vpop.f32.mrb[0].mxu0
        %v775 = vadd.f32 0.0, %v774
        %v776 = vpop.f32.mrb[0].mxu0
        %v777 = vadd.f32 0.0, %v776
        %778 = vdwg.mxu0
        %v779 = vadd.f32 %v654, %v761
        %v780 = vadd.f32 %v655, %v763
        %v781 = vadd.f32 %v656, %v765
        %v782 = vadd.f32 %v657, %v767
        %v783 = vadd.f32 %v658, %v771
        %v784 = vadd.f32 %v659, %v773
        %v785 = vadd.f32 %v660, %v775
        %v786 = vadd.f32 %v661, %v777
        %v787 = vld [vmem:[%s2] sm:$0xff]
        %v788 = vld [vmem:[%s2 + $0x8] sm:$0xff]
        %v789 = vld [vmem:[%s2 + $0x10] sm:$0xff]
        %v790 = vld [vmem:[%s2 + $0x18] sm:$0xff]
        %792 = vset.pattern.permute.xlu0 0
        %793 = vperm.xlu0 %792, %v787
        %v794 = vpop.permute.xlu0 %793
        %797 = vset.pattern.permute.xlu0 0
        %798 = vperm.xlu0 %797, %v788
        %v799 = vpop.permute.xlu0 %798
        %802 = vset.pattern.permute.xlu0 0
        %803 = vperm.xlu0 %802, %v789
        %v804 = vpop.permute.xlu0 %803
        %807 = vset.pattern.permute.xlu0 0
        %808 = vperm.xlu0 %807, %v790
        %v809 = vpop.permute.xlu0 %808
        %v811 = vadd.f32 %v779, %v794
        %v812 = vadd.f32 %v780, %v794
        %v813 = vadd.f32 %v781, %v799
        %v814 = vadd.f32 %v782, %v799
        %v815 = vadd.f32 %v783, %v804
        %v816 = vadd.f32 %v784, %v804
        %v817 = vadd.f32 %v785, %v809
        %v818 = vadd.f32 %v786, %v809
        %819 = vst [vmem:[%s203] sm:$0xff] %v811
        %820 = vst [vmem:[%s203 + $0x8] sm:$0xff] %v812
        %821 = vst [vmem:[%s203 + $0x10] sm:$0xff] %v813
        %822 = vst [vmem:[%s203 + $0x18] sm:$0xff] %v814
        %823 = vst [vmem:[%s203 + $0x20] sm:$0xff] %v815
        %824 = vst [vmem:[%s203 + $0x28] sm:$0xff] %v816
        %825 = vst [vmem:[%s203 + $0x30] sm:$0xff] %v817
        %826 = vst [vmem:[%s203 + $0x38] sm:$0xff] %v818
        %s827 = sand.u32 %s97, 1
        %s828 = scalar_lea.sflag [#allocation4], %s827
        %s829 = sand.u32 %s97, 1
        %s830 = smul.addr %s829, 64
        %s831 = scalar_lea.vmem [#allocation7], %s830
        // Predicated region
        $region41: #{tpu_custom_call.1} parent=31 // pred_check
          %p832 = pneg %p107
        $region42: #{tpu_custom_call.1} parent=31 // pred_check_branch
          %834 = sbr.rel (%p832) target = $region44
        $region43: #{tpu_custom_call.1} parent=31 // pred_region
          %s836 = ssub.s32 1024, 1024
          %837 = vsyncadd %s828, %s836
          %s838 = smul.addr %s21, 8
          %s839 = smul.addr %s838, 128
          %s840 = scalar_lea.hbm %s3, %s839
          %s841 = sshll.u32 %s831, 4
          %s842 = int_to_ptr.vmem [resolvable:$true] %s841
          %847 = dma.vmem_to_hbm [thread:$0]  %s842, 1024, %s840, %s828, 256, 256, 16
        $region44: #{tpu_custom_call.1} parent=31 // pred_fallthru
          _
      $region32: #{tpu_custom_call.1} parent=5 // pred_fallthru
        _
      %p848 = scmp.le.s32.totalorder 2, %s16
      // Predicated region
      $region45: #{tpu_custom_call.1} parent=5 // pred_check
        %p849 = pneg %p848
      $region46: #{tpu_custom_call.1} parent=5 // pred_check_branch
        %851 = sbr.rel (%p849) target = $region48
      $region47: #{tpu_custom_call.1} parent=5 // pred_region
        %s852 = ssub.s32 %s16, 2
        // Predicated region
        $region49: #{tpu_custom_call.1} parent=47 // pred_check
          %p853 = pneg %p113
        $region50: #{tpu_custom_call.1} parent=47 // pred_check_branch
          %855 = sbr.rel (%p853) target = $region52
        $region51: #{tpu_custom_call.1} parent=47 // pred_region
          %s856 = sand.u32 %s98, 1
          %s857 = scalar_lea.sflag [#allocation4], %s856
          %s858 = sand.u32 %s98, 1
          %s859 = smul.addr %s858, 64
          %s860 = scalar_lea.vmem [#allocation7], %s859
          %861 = dma.done %s857, 1024
        $region52: #{tpu_custom_call.1} parent=47 // pred_fallthru
          _
      $region48: #{tpu_custom_call.1} parent=5 // pred_fallthru
        _
    $region6: #{tpu_custom_call.1} parent=1 // loop_footer
      %s20 = sadd.s32 1, %s16
    $region7: #{tpu_custom_call.1} parent=1 // loop_footer_branch
      %15 = sbr.rel target = $region3
    $region8: #{tpu_custom_call.1} parent=1 // loop_exit
      _
    %862 = vsyncpa [#allocation3], 1
    %s863 = scalar_lea.sflag [#allocation3], 1
    %864 = vsyncpa %s863, 1
    %865 = vsyncpa [#allocation6], 1
    %866 = vsyncpa [#allocation4], 1
    %s867 = scalar_lea.sflag [#allocation4], 1
    %868 = vsyncpa %s867, 1

</llo_original>
